<compile_context>
chip_gen: v6e
topology: v6e:2x2x1
jax: 0.10.0
libtpu: 0.0.40
codegen_flags: <defaults>
</compile_context>

<pallas_src>
import jax
import jax.numpy as jnp
from jax.experimental import pallas as pl
from jax.experimental.pallas import tpu as pltpu

_LANE = 128
_VMEM_LIMIT = 48 * 1024 * 1024            # safe on v7x (64 MiB/TC), fine on v5e/v6e
_RESIDENT_SUPPORT_CAP = 16 * 1024 * 1024  # single-copy cap for VMEM-resident support
_MAX_SINGLE_TN = 512                      # single column tile up to this width


def _round_up(x, m):
    return ((x + m - 1) // m) * m


def _choose_row_tile(n):
    """Row tile: prefer 256 (feeds the 256x256 MXU on v6e/v7x) when it does not
    inflate padding and still leaves >= 2 row tiles for cross-TC sharding;
    otherwise 128 (also the right size for v5e's 4x128^2 MXUs)."""
    n128 = _round_up(n, 128)
    n256 = _round_up(n, 256)
    if n256 == n128 and n256 // 256 >= 2:
        return 256, n256
    return 128, n128


def _choose_tk(n_pad):
    """Largest reduction tile in {512, 256, 128} that divides n_pad (n_pad is
    always a multiple of 128, so 128 always works)."""
    for cand in (512, 256, 128):
        if n_pad % cand == 0:
            return cand
    return 128


def _pad2d(x, rows, cols, dtype):
    """Cast/pad only when actually needed (avoid an extra HBM pass over the
    O(N^2) adjacency when it is already aligned)."""
    if x.dtype != dtype:
        x = x.astype(dtype)
    pr, pc = rows - x.shape[0], cols - x.shape[1]
    if pr or pc:
        x = jnp.pad(x, ((0, pr), (0, pc)))
    return x


# ---------------------------------------------------------------------------
# Stage 1: support = X @ W   (tall-skinny; K axis not tiled, W VMEM-resident)
# ---------------------------------------------------------------------------
def _xw_kernel(x_ref, w_ref, o_ref):
    o_ref[...] = jnp.dot(x_ref[...], w_ref[...],
                         preferred_element_type=jnp.float32).astype(o_ref.dtype)


def _support_matmul(x_p, w_p, tm, out_dtype):
    m, k = x_p.shape
    k2, n = w_p.shape
    assert k == k2 and m % tm == 0
    cost = pl.CostEstimate(
        flops=2 * m * n * k,
        transcendentals=0,
        bytes_accessed=(x_p.size * x_p.dtype.itemsize
                        + w_p.size * w_p.dtype.itemsize
                        + m * n * jnp.dtype(out_dtype).itemsize),
    )
    return pl.pallas_call(
        _xw_kernel,
        out_shape=jax.ShapeDtypeStruct((m, n), out_dtype),
        grid_spec=pltpu.PrefetchScalarGridSpec(
            num_scalar_prefetch=0,
            grid=(m // tm,),
            in_specs=[
                pl.BlockSpec((tm, k), lambda i: (i, 0)),
                pl.BlockSpec((k, n), lambda i: (0, 0)),   # W resident, DMA'd once
            ],
            out_specs=pl.BlockSpec((tm, n), lambda i: (i, 0)),
        ),
        compiler_params=pltpu.CompilerParams(
            dimension_semantics=("parallel",),
            vmem_limit_bytes=_VMEM_LIMIT,
        ),
        cost_estimate=cost,
    )(x_p, w_p)


# ---------------------------------------------------------------------------
# Stage 2: out = A @ support (+ bias)
# ---------------------------------------------------------------------------
def _make_resident_kernel(tk, direct_out):
    """Grid = (row_tiles, k_tiles); support is a single VMEM-resident block."""
    def kernel(a_ref, s_ref, b_ref, o_ref, *scratch):
        acc = o_ref if direct_out else scratch[0]
        l = pl.program_id(1)

        @pl.when(l == 0)
        def _init():
            acc[...] = jnp.zeros_like(acc)

        k0 = pl.multiple_of(l * tk, tk)
        acc[...] += jnp.dot(a_ref[...], s_ref[pl.ds(k0, tk), :],
                            preferred_element_type=jnp.float32)

        @pl.when(l == pl.num_programs(1) - 1)
        def _finalize():
            # Bias added exactly once, on the f32 accumulator.
            if direct_out:
                o_ref[...] += b_ref[...]
            else:
                o_ref[...] = (acc[...] + b_ref[...]).astype(o_ref.dtype)
    return kernel


def _make_stream_kernel(direct_out):
    """Grid = (row_tiles, col_tiles, k_tiles); support streamed per (l, j)."""
    def kernel(a_ref, s_ref, b_ref, o_ref, *scratch):
        acc = o_ref if direct_out else scratch[0]
        l = pl.program_id(2)

        @pl.when(l == 0)
        def _init():
            acc[...] = jnp.zeros_like(acc)

        acc[...] += jnp.dot(a_ref[...], s_ref[...],
                            preferred_element_type=jnp.float32)

        @pl.when(l == pl.num_programs(2) - 1)
        def _finalize():
            if direct_out:
                o_ref[...] += b_ref[...]
            else:
                o_ref[...] = (acc[...] + b_ref[...]).astype(o_ref.dtype)
    return kernel


def _aggregate_matmul(a_p, support, bias_p, tm, out_dtype):
    m, k = a_p.shape          # (n_pad, n_pad)
    k2, n = support.shape     # (n_pad, d_out_pad)
    assert k == k2 and m % tm == 0
    tk = _choose_tk(k)
    direct_out = jnp.dtype(out_dtype) == jnp.dtype(jnp.float32)

    support_bytes = support.size * support.dtype.itemsize
    resident = (support_bytes <= _RESIDENT_SUPPORT_CAP) and (n <= _MAX_SINGLE_TN)

    if resident:
        kernel = _make_resident_kernel(tk, direct_out)
        grid = (m // tm, k // tk)
        in_specs = [
            pl.BlockSpec((tm, tk), lambda i, l: (i, l)),
            pl.BlockSpec((k, n), lambda i, l: (0, 0)),      # support resident
            pl.BlockSpec((1, n), lambda i, l: (0, 0)),       # bias resident
        ]
        out_spec = pl.BlockSpec((tm, n), lambda i, l: (i, 0))
        semantics = ("parallel", "arbitrary")
        scratch_shapes = [] if direct_out else [pltpu.VMEM((tm, n), jnp.float32)]
        bytes_accessed = (a_p.size * a_p.dtype.itemsize
                          + support_bytes
                          + bias_p.size * bias_p.dtype.itemsize
                          + m * n * jnp.dtype(out_dtype).itemsize)
    else:
        tn = 256 if n % 256 == 0 else 128
        kernel = _make_stream_kernel(direct_out)
        grid = (m // tm, n // tn, k // tk)
        in_specs = [
            pl.BlockSpec((tm, tk), lambda i, j, l: (i, l)),
            pl.BlockSpec((tk, tn), lambda i, j, l: (l, j)),
            pl.BlockSpec((1, tn), lambda i, j, l: (0, j)),
        ]
        out_spec = pl.BlockSpec((tm, tn), lambda i, j, l: (i, j))
        semantics = ("parallel", "parallel", "arbitrary")
        scratch_shapes = [] if direct_out else [pltpu.VMEM((tm, tn), jnp.float32)]
        bytes_accessed = (a_p.size * a_p.dtype.itemsize * (n // tn)
                          + support_bytes * (m // tm)
                          + bias_p.size * bias_p.dtype.itemsize
                          + m * n * jnp.dtype(out_dtype).itemsize)

    cost = pl.CostEstimate(flops=2 * m * n * k, transcendentals=0,
                           bytes_accessed=bytes_accessed)

    return pl.pallas_call(
        kernel,
        out_shape=jax.ShapeDtypeStruct((m, n), out_dtype),
        grid_spec=pltpu.PrefetchScalarGridSpec(
            num_scalar_prefetch=0,
            grid=grid,
            in_specs=in_specs,
            out_specs=out_spec,
            scratch_shapes=scratch_shapes,
        ),
        compiler_params=pltpu.CompilerParams(
            dimension_semantics=semantics,
            vmem_limit_bytes=_VMEM_LIMIT,
        ),
        cost_estimate=cost,
    )(a_p, support, bias_p)


# ---------------------------------------------------------------------------
# Public wrapper (== GraphAggregator.forward)
# ---------------------------------------------------------------------------
def graph_aggregator(adjacency, input_feature, weight, bias=None,
                     *, compute_dtype=None):
    """Pallas implementation of GraphAggregator.forward.

    compute_dtype: optional (e.g. jnp.bfloat16) dtype for the matmul operands;
    accumulation and bias stay f32, output keeps the input dtype.  bf16 halves
    the HBM traffic of the dominant O(N^2) adjacency stream at the cost of a
    small numeric deviation from the f32 PyTorch reference.
    """
    n, d_in = input_feature.shape
    d_in2, d_out = weight.shape
    assert d_in == d_in2
    assert adjacency.shape == (n, n)

    out_dtype = input_feature.dtype
    cd = jnp.dtype(compute_dtype) if compute_dtype is not None else jnp.dtype(out_dtype)

    # --- lane/MXU friendly padding (zero padding is exact for matmul+bias) ---
    tm, n_pad = _choose_row_tile(n)
    d_in_pad = _round_up(d_in, _LANE)
    d_out_pad = _round_up(d_out, _LANE)

    x_p = _pad2d(input_feature, n_pad, d_in_pad, cd)
    w_p = _pad2d(weight, d_in_pad, d_out_pad, cd)
    a_p = _pad2d(adjacency, n_pad, n_pad, cd)   # no-op when aligned & same dtype

    # --- stage 1: support = X @ W (computed once, stored in compute dtype) ---
    support = _support_matmul(x_p, w_p, tm, cd)

    # --- stage 2: out = A @ support (+ bias folded into the last K step) -----
    if bias is not None:
        b = bias.astype(jnp.float32).reshape(1, d_out)
    else:
        b = jnp.zeros((1, d_out), jnp.float32)
    b_p = _pad2d(b, 1, d_out_pad, jnp.float32)

    out_p = _aggregate_matmul(a_p, support, b_p, tm, out_dtype)
    return out_p[:n, :d_out]


def xavier_uniform(key, shape, dtype=jnp.float32):
    # Matches torch.nn.init.xavier_uniform_ (gain=1.0) for a 2-D weight.
    fan_in, fan_out = shape
    limit = (6.0 / (fan_in + fan_out)) ** 0.5
    return jax.random.uniform(key, shape, dtype, minval=-limit, maxval=limit)


def _reference(adjacency, input_feature, weight, bias):
    out = adjacency @ (input_feature @ weight)
    if bias is not None:
        out = out + bias
    return out


if __name__ == "__main__":
    key = jax.random.PRNGKey(0)

    def _case(n, d_in, d_out, key, *, with_bias=True):
        k_adj, k_x, k_w, k_b, key = jax.random.split(key, 5)
        adjacency = jax.random.uniform(k_adj, (n, n), dtype=jnp.float32)
        x = jax.random.normal(k_x, (n, d_in), dtype=jnp.float32)
        weight = xavier_uniform(k_w, (d_in, d_out))
        bias = (0.1 * jax.random.normal(k_b, (d_out,), dtype=jnp.float32)
                if with_bias else None)
        return adjacency, x, weight, bias, key

    # ---- Case 1: toy module size (8 nodes, 32 -> 16), f32, zero bias ------
    adjacency, x, weight, _, key = _case(8, 32, 16, key)
    bias = jnp.zeros((16,), dtype=jnp.float32)      # reset_parameters(): zeros
    out = jax.block_until_ready(graph_aggregator(adjacency, x, weight, bias))
    ref = _reference(adjacency, x, weight, bias)
    assert out.shape == (8, 16)
    assert jnp.allclose(out, ref, atol=1e-4, rtol=1e-4)

    # ---- Case 2: ragged sizes (resident-support path, TM=128) -------------
    adjacency, x, weight, bias, key = _case(384, 192, 160, key)
    ref = _reference(adjacency, x, weight, bias)
    out_f32 = jax.block_until_ready(graph_aggregator(adjacency, x, weight, bias))
    assert out_f32.shape == (384, 160)
    assert jnp.allclose(out_f32, ref, atol=1e-3, rtol=1e-3)

    # no-bias path (use_bias=False in the module)
    out_nb = jax.block_until_ready(graph_aggregator(adjacency, x, weight, None))
    assert jnp.allclose(out_nb, _reference(adjacency, x, weight, None),
                        atol=1e-3, rtol=1e-3)

    # ---- Case 3: 256-row tiles + tk=512 + bf16 compute --------------------
    adjacency, x, weight, bias, key = _case(1024, 256, 128, key)
    ref = _reference(adjacency, x, weight, bias)
    out_f32 = jax.block_until_ready(graph_aggregator(adjacency, x, weight, bias))
    assert jnp.allclose(out_f32, ref, atol=2e-3, rtol=2e-3)

    out_bf16 = jax.block_until_ready(
        graph_aggregator(adjacency, x, weight, bias, compute_dtype=jnp.bfloat16))
    rel_err = jnp.max(jnp.abs(out_bf16.astype(jnp.float32) - ref)) / (
        jnp.max(jnp.abs(ref)) + 1e-6)
    assert rel_err < 4e-2, float(rel_err)

    # ---- Case 4: wide d_out exercises the streaming (3-axis) fallback -----
    adjacency, x, weight, bias, key = _case(256, 96, 640, key)
    ref = _reference(adjacency, x, weight, bias)
    out_wide = jax.block_until_ready(graph_aggregator(adjacency, x, weight, bias))
    assert out_wide.shape == (256, 640)
    assert jnp.allclose(out_wide, ref, atol=1e-3, rtol=1e-3)

    print("KERNEL_OK")
</pallas_src>

<mosaic_0001>
module attributes {stable_mosaic.version = 11 : i64} {
  func.func @_xw_kernel(%arg0: i32, %arg1: memref<128x128xf32, #tpu.memory_space<vmem>>, %arg2: memref<128x128xf32, #tpu.memory_space<vmem>>, %arg3: memref<128x128xf32, #tpu.memory_space<vmem>>) attributes {dimension_semantics = [#tpu.dimension_semantics<parallel>], iteration_bounds = array<i64: 1>, scalar_prefetch = 0 : i64, scratch_operands = 0 : i64, tpu.core_type = #tpu.core_type<tc>, window_params = [{transform_indices = @transform_0, window_bounds = array<i64: 128, 128>}, {pipeline_mode = #tpu.pipeline_mode<synchronous>, transform_indices = @transform_1, window_bounds = array<i64: 128, 128>}, {transform_indices = @transform_2, window_bounds = array<i64: 128, 128>}]} {
    %c0 = arith.constant 0 : index
    %c0_0 = arith.constant 0 : index
    %0 = vector.load %arg1[%c0, %c0_0] : memref<128x128xf32, #tpu.memory_space<vmem>>, vector<128x128xf32>
    %c0_1 = arith.constant 0 : index
    %c0_2 = arith.constant 0 : index
    %1 = vector.load %arg2[%c0_1, %c0_2] : memref<128x128xf32, #tpu.memory_space<vmem>>, vector<128x128xf32>
    %cst = arith.constant dense<0.000000e+00> : vector<128x128xf32>
    %2 = tpu.matmul %0, %1, %cst {dimension_numbers = #tpu.dot_dimension_numbers<[1], [0], [0], [1], [0, 0, 1, 1], [], []>} : vector<128x128xf32>, vector<128x128xf32>, vector<128x128xf32> -> vector<128x128xf32>
    %c0_3 = arith.constant 0 : index
    %c0_4 = arith.constant 0 : index
    %3 = vector.load %arg3[%c0_3, %c0_4] : memref<128x128xf32, #tpu.memory_space<vmem>>, vector<128x128xf32>
    tpu.vector_store %arg3[%c0_3, %c0_4], %2 {strides = array<i32>} : memref<128x128xf32, #tpu.memory_space<vmem>>, vector<128x128xf32>,
    return
  }
  func.func @transform_0(%arg0: i32) -> (i32, i32) {
    %c0_i32 = arith.constant 0 : i32
    %c0_i32_0 = arith.constant 0 : i32
    return %arg0, %c0_i32 : i32, i32
  }
  func.func @transform_1(%arg0: i32) -> (i32, i32) {
    %c0_i32 = arith.constant 0 : i32
    %c0_i32_0 = arith.constant 0 : i32
    %c0_i32_1 = arith.constant 0 : i32
    return %c0_i32, %c0_i32_0 : i32, i32
  }
  func.func @transform_2(%arg0: i32) -> (i32, i32) {
    %c0_i32 = arith.constant 0 : i32
    %c0_i32_0 = arith.constant 0 : i32
    return %arg0, %c0_i32 : i32, i32
  }
}

</mosaic_0001>

<llo_original>
// kernel: tpu_custom_call.1
$region0: #{tpu_custom_call.1}
  #allocation0 [shape = 'u32[]', space=smem, size = 0x4, offset = 0x4, fixed_abs, tag = 'smem constant byte address 0x4 - core index']
  #allocation1 [shape = 'u32[144,128]{1,0:T(1,128)}', space=vmem, size = 0x12000, scoped, tag = 'internal scratch']
  %s0 = inlined_call_operand.hbm [shape: f32[128,128], index: 0, kind: input, shape index: {}]
  %s1 = inlined_call_operand.hbm [shape: f32[128,128], index: 1, kind: input, shape index: {}]
  %s2 = inlined_call_operand.hbm [shape: f32[128,128], index: 2, kind: output, shape index: {}]
  %s3 = sld [smem:[#allocation0]]
  $region26: #{tpu_custom_call.1} parent=0
    _
  %s5 = ssub.s32 1, %s3
  %s6 = scalar_select 0, %s5, %s3
  $region1: #{tpu_custom_call.1} parent=0
    #allocation2 [shape = 'u8[65536]{0}', space=vmem, size = 0x10000, scoped, tag = 'input window, operand 0, single buffered']
    #allocation3 [shape = 's32[1]{0}', space=sflag, size = 0x4, scoped, tag = 'scoped memory for tpu_custom_call.1']
    #allocation4 [shape = 's32[1]{0}', space=sflag, size = 0x4, scoped, tag = 'scoped memory for tpu_custom_call.1']
    #allocation5 [shape = 'u8[65536]{0}', space=vmem, size = 0x10000, scoped, tag = 'input window, operand 1, single buffered']
    #allocation6 [shape = 's32[1]{0}', space=sflag, size = 0x4, scoped, tag = 'scoped memory for tpu_custom_call.1']
    #allocation7 [shape = 'u8[65536]{0}', space=vmem, size = 0x10000, scoped, tag = 'output window, operand 0, single buffered']
    %7 = vsyncpa [#allocation3], 0
    %8 = vsyncpa [#allocation6], 0
    %9 = vsyncpa [#allocation4], 0
    // Predicated region
    $region2: #{tpu_custom_call.1} parent=1 // pred_check
      _
    $region3: #{tpu_custom_call.1} parent=1 // pred_check_branch
      %11 = sbr.rel (0) target = $region5
    $region4: #{tpu_custom_call.1} parent=1 // pred_region
      %s13 = ssub.s32 2048, 2048
      %14 = vsyncadd [#allocation3], %s13
      %s15 = sshll.u32 [#allocation2], 4
      %s16 = int_to_ptr.vmem [resolvable:$true] %s15
      %21 = dma.hbm_to_vmem [thread:$0]  %s0, 2048, %s16, [#allocation3], 128, 128, 8
    $region5: #{tpu_custom_call.1} parent=1 // pred_fallthru
      _
    // Predicated region
    $region6: #{tpu_custom_call.1} parent=1 // pred_check
      _
    $region7: #{tpu_custom_call.1} parent=1 // pred_check_branch
      %23 = sbr.rel (0) target = $region9
    $region8: #{tpu_custom_call.1} parent=1 // pred_region
      %s25 = ssub.s32 2048, 2048
      %26 = vsyncadd [#allocation6], %s25
      %s27 = sshll.u32 [#allocation5], 4
      %s28 = int_to_ptr.vmem [resolvable:$true] %s27
      %33 = dma.hbm_to_vmem [thread:$0]  %s1, 2048, %s28, [#allocation6], 128, 128, 8
    $region9: #{tpu_custom_call.1} parent=1 // pred_fallthru
      _
    // Predicated region
    $region10: #{tpu_custom_call.1} parent=1 // pred_check
      _
    $region11: #{tpu_custom_call.1} parent=1 // pred_check_branch
      %35 = sbr.rel (0) target = $region13
    $region12: #{tpu_custom_call.1} parent=1 // pred_region
      %36 = dma.done [#allocation3], 2048
    $region13: #{tpu_custom_call.1} parent=1 // pred_fallthru
      _
    // Predicated region
    $region14: #{tpu_custom_call.1} parent=1 // pred_check
      _
    $region15: #{tpu_custom_call.1} parent=1 // pred_check_branch
      %38 = sbr.rel (0) target = $region17
    $region16: #{tpu_custom_call.1} parent=1 // pred_region
      %39 = dma.done [#allocation6], 2048
    $region17: #{tpu_custom_call.1} parent=1 // pred_fallthru
      _
    %v40 = vld [vmem:[#allocation2] sm:$0xff]
    %v41 = vld [vmem:[#allocation2 + $0x8] sm:$0xff]
    %v42 = vld [vmem:[#allocation2 + $0x10] sm:$0xff]
    %v43 = vld [vmem:[#allocation2 + $0x18] sm:$0xff]
    %v44 = vld [vmem:[#allocation2 + $0x20] sm:$0xff]
    %v45 = vld [vmem:[#allocation2 + $0x28] sm:$0xff]
    %v46 = vld [vmem:[#allocation2 + $0x30] sm:$0xff]
    %v47 = vld [vmem:[#allocation2 + $0x38] sm:$0xff]
    %v48 = vld [vmem:[#allocation2 + $0x40] sm:$0xff]
    %v49 = vld [vmem:[#allocation2 + $0x48] sm:$0xff]
    %v50 = vld [vmem:[#allocation2 + $0x50] sm:$0xff]
    %v51 = vld [vmem:[#allocation2 + $0x58] sm:$0xff]
    %v52 = vld [vmem:[#allocation2 + $0x60] sm:$0xff]
    %v53 = vld [vmem:[#allocation2 + $0x68] sm:$0xff]
    %v54 = vld [vmem:[#allocation2 + $0x70] sm:$0xff]
    %v55 = vld [vmem:[#allocation2 + $0x78] sm:$0xff]
    %v56 = vld [vmem:[#allocation5] sm:$0xff]
    %v57 = vld [vmem:[#allocation5 + $0x8] sm:$0xff]
    %v58 = vld [vmem:[#allocation5 + $0x10] sm:$0xff]
    %v59 = vld [vmem:[#allocation5 + $0x18] sm:$0xff]
    %v60 = vld [vmem:[#allocation5 + $0x20] sm:$0xff]
    %v61 = vld [vmem:[#allocation5 + $0x28] sm:$0xff]
    %v62 = vld [vmem:[#allocation5 + $0x30] sm:$0xff]
    %v63 = vld [vmem:[#allocation5 + $0x38] sm:$0xff]
    %v64 = vld [vmem:[#allocation5 + $0x40] sm:$0xff]
    %v65 = vld [vmem:[#allocation5 + $0x48] sm:$0xff]
    %v66 = vld [vmem:[#allocation5 + $0x50] sm:$0xff]
    %v67 = vld [vmem:[#allocation5 + $0x58] sm:$0xff]
    %v68 = vld [vmem:[#allocation5 + $0x60] sm:$0xff]
    %v69 = vld [vmem:[#allocation5 + $0x68] sm:$0xff]
    %v70 = vld [vmem:[#allocation5 + $0x70] sm:$0xff]
    %v71 = vld [vmem:[#allocation5 + $0x78] sm:$0xff]
    %72 = vmatprep.subr.mxu0 0.0
    %73 = vmatpush1.msra.mxu0 %v71
    %74 = vmatprep.subr.mxu0 0.0
    %75 = vmatpush1.msra.mxu0 %v70
    %76 = vmatprep.subr.mxu0 0.0
    %77 = vmatpush1.msra.mxu0 %v69
    %78 = vmatprep.subr.mxu0 0.0
    %79 = vmatpush1.msra.mxu0 %v68
    %80 = vmatprep.subr.mxu0 0.0
    %81 = vmatpush1.msra.mxu0 %v67
    %82 = vmatprep.subr.mxu0 0.0
    %83 = vmatpush1.msra.mxu0 %v66
    %84 = vmatprep.subr.mxu0 0.0
    %85 = vmatpush1.msra.mxu0 %v65
    %86 = vmatprep.subr.mxu0 0.0
    %87 = vmatpush1.msra.mxu0 %v64
    %88 = vmatprep.subr.mxu0 0.0
    %89 = vmatpush1.msra.mxu0 %v63
    %90 = vmatprep.subr.mxu0 0.0
    %91 = vmatpush1.msra.mxu0 %v62
    %92 = vmatprep.subr.mxu0 0.0
    %93 = vmatpush1.msra.mxu0 %v61
    %94 = vmatprep.subr.mxu0 0.0
    %95 = vmatpush1.msra.mxu0 %v60
    %96 = vmatprep.subr.mxu0 0.0
    %97 = vmatpush1.msra.mxu0 %v59
    %98 = vmatprep.subr.mxu0 0.0
    %99 = vmatpush1.msra.mxu0 %v58
    %100 = vmatprep.subr.mxu0 0.0
    %101 = vmatpush1.msra.mxu0 %v57
    %102 = vmatprep.subr.mxu0 0.0
    %103 = vmatpush1.msra.mxu0 %v56
    %104 = vmatprep.subr.mxu0 0.0
    %105 = vmatpush2.msra.mxu0 0.0
    %106 = vmatprep.subr.mxu0 0.0
    %107 = vmatpush2.msra.mxu0 0.0
    %108 = vmatprep.subr.mxu0 0.0
    %109 = vmatpush2.msra.mxu0 0.0
    %110 = vmatprep.subr.mxu0 0.0
    %111 = vmatpush2.msra.mxu0 0.0
    %112 = vmatprep.subr.mxu0 0.0
    %113 = vmatpush2.msra.mxu0 0.0
    %114 = vmatprep.subr.mxu0 0.0
    %115 = vmatpush2.msra.mxu0 0.0
    %116 = vmatprep.subr.mxu0 0.0
    %117 = vmatpush2.msra.mxu0 0.0
    %118 = vmatprep.subr.mxu0 0.0
    %119 = vmatpush2.msra.mxu0 0.0
    %120 = vmatprep.subr.mxu0 0.0
    %121 = vmatpush2.msra.mxu0 0.0
    %122 = vmatprep.subr.mxu0 0.0
    %123 = vmatpush2.msra.mxu0 0.0
    %124 = vmatprep.subr.mxu0 0.0
    %125 = vmatpush2.msra.mxu0 0.0
    %126 = vmatprep.subr.mxu0 0.0
    %127 = vmatpush2.msra.mxu0 0.0
    %128 = vmatprep.subr.mxu0 0.0
    %129 = vmatpush2.msra.mxu0 0.0
    %130 = vmatprep.subr.mxu0 0.0
    %131 = vmatpush2.msra.mxu0 0.0
    %132 = vmatprep.subr.mxu0 0.0
    %133 = vmatpush2.msra.mxu0 0.0
    %134 = vmatprep.subr.mxu0 0.0
    %135 = vmatpush2.msra.mxu0 0.0
    %136 = vmatprep.mubr.f32.mxu0 0.0
    %137 = vmatmul.mubr.f32.gmra.mxu0 %v40
    %v138 = vpop.f32.mrf.mxu0
    %v139 = vadd.f32 0.0, %v138
    %v140 = vpop.f32.mrf.mxu0
    %141 = vmatprep.mubr.f32.mxu0 0.0
    %142 = vmatmul.mubr.f32.gmra.mxu0 %v41
    %v143 = vpop.f32.mrf.mxu0
    %v144 = vadd.f32 0.0, %v143
    %v145 = vpop.f32.mrf.mxu0
    %146 = vmatprep.mubr.f32.mxu0 0.0
    %147 = vmatmul.mubr.f32.gmra.mxu0 %v42
    %v148 = vpop.f32.mrf.mxu0
    %v149 = vadd.f32 0.0, %v148
    %v150 = vpop.f32.mrf.mxu0
    %151 = vmatprep.mubr.f32.mxu0 0.0
    %152 = vmatmul.mubr.f32.gmra.mxu0 %v43
    %v153 = vpop.f32.mrf.mxu0
    %v154 = vadd.f32 0.0, %v153
    %v155 = vpop.f32.mrf.mxu0
    %156 = vmatprep.mubr.f32.mxu0 0.0
    %157 = vmatmul.mubr.f32.gmra.mxu0 %v44
    %v158 = vpop.f32.mrf.mxu0
    %v159 = vadd.f32 0.0, %v158
    %v160 = vpop.f32.mrf.mxu0
    %161 = vmatprep.mubr.f32.mxu0 0.0
    %162 = vmatmul.mubr.f32.gmra.mxu0 %v45
    %v163 = vpop.f32.mrf.mxu0
    %v164 = vadd.f32 0.0, %v163
    %v165 = vpop.f32.mrf.mxu0
    %166 = vmatprep.mubr.f32.mxu0 0.0
    %167 = vmatmul.mubr.f32.gmra.mxu0 %v46
    %v168 = vpop.f32.mrf.mxu0
    %v169 = vadd.f32 0.0, %v168
    %v170 = vpop.f32.mrf.mxu0
    %171 = vmatprep.mubr.f32.mxu0 0.0
    %172 = vmatmul.mubr.f32.gmra.mxu0 %v47
    %v173 = vpop.f32.mrf.mxu0
    %v174 = vadd.f32 0.0, %v173
    %v175 = vpop.f32.mrf.mxu0
    %176 = vmatprep.mubr.f32.mxu0 0.0
    %177 = vmatmul.mubr.f32.gmra.mxu0 %v48
    %v178 = vpop.f32.mrf.mxu0
    %v179 = vadd.f32 0.0, %v178
    %v180 = vpop.f32.mrf.mxu0
    %181 = vmatprep.mubr.f32.mxu0 0.0
    %182 = vmatmul.mubr.f32.gmra.mxu0 %v49
    %v183 = vpop.f32.mrf.mxu0
    %v184 = vadd.f32 0.0, %v183
    %v185 = vpop.f32.mrf.mxu0
    %186 = vmatprep.mubr.f32.mxu0 0.0
    %187 = vmatmul.mubr.f32.gmra.mxu0 %v50
    %v188 = vpop.f32.mrf.mxu0
    %v189 = vadd.f32 0.0, %v188
    %v190 = vpop.f32.mrf.mxu0
    %191 = vmatprep.mubr.f32.mxu0 0.0
    %192 = vmatmul.mubr.f32.gmra.mxu0 %v51
    %v193 = vpop.f32.mrf.mxu0
    %v194 = vadd.f32 0.0, %v193
    %v195 = vpop.f32.mrf.mxu0
    %196 = vmatprep.mubr.f32.mxu0 0.0
    %197 = vmatmul.mubr.f32.gmra.mxu0 %v52
    %v198 = vpop.f32.mrf.mxu0
    %v199 = vadd.f32 0.0, %v198
    %v200 = vpop.f32.mrf.mxu0
    %201 = vmatprep.mubr.f32.mxu0 0.0
    %202 = vmatmul.mubr.f32.gmra.mxu0 %v53
    %v203 = vpop.f32.mrf.mxu0
    %v204 = vadd.f32 0.0, %v203
    %v205 = vpop.f32.mrf.mxu0
    %206 = vmatprep.mubr.f32.mxu0 0.0
    %207 = vmatmul.mubr.f32.gmra.mxu0 %v54
    %v208 = vpop.f32.mrf.mxu0
    %v209 = vadd.f32 0.0, %v208
    %v210 = vpop.f32.mrf.mxu0
    %211 = vmatprep.mubr.f32.mxu0 0.0
    %212 = vmatmul.mubr.f32.gmra.mxu0 %v55
    %v213 = vpop.f32.mrf.mxu0
    %v214 = vadd.f32 0.0, %v213
    %v215 = vpop.f32.mrf.mxu0
    %216 = vdwg.mxu0
    %217 = vst [vmem:[#allocation7] sm:$0xff] %v139
    %218 = vst [vmem:[#allocation7 + $0x8] sm:$0xff] %v144
    %219 = vst [vmem:[#allocation7 + $0x10] sm:$0xff] %v149
    %220 = vst [vmem:[#allocation7 + $0x18] sm:$0xff] %v154
    %221 = vst [vmem:[#allocation7 + $0x20] sm:$0xff] %v159
    %222 = vst [vmem:[#allocation7 + $0x28] sm:$0xff] %v164
    %223 = vst [vmem:[#allocation7 + $0x30] sm:$0xff] %v169
    %224 = vst [vmem:[#allocation7 + $0x38] sm:$0xff] %v174
    %225 = vst [vmem:[#allocation7 + $0x40] sm:$0xff] %v179
    %226 = vst [vmem:[#allocation7 + $0x48] sm:$0xff] %v184
    %227 = vst [vmem:[#allocation7 + $0x50] sm:$0xff] %v189
    %228 = vst [vmem:[#allocation7 + $0x58] sm:$0xff] %v194
    %229 = vst [vmem:[#allocation7 + $0x60] sm:$0xff] %v199
    %230 = vst [vmem:[#allocation7 + $0x68] sm:$0xff] %v204
    %231 = vst [vmem:[#allocation7 + $0x70] sm:$0xff] %v209
    %232 = vst [vmem:[#allocation7 + $0x78] sm:$0xff] %v214
    // Predicated region
    $region18: #{tpu_custom_call.1} parent=1 // pred_check
      _
    $region19: #{tpu_custom_call.1} parent=1 // pred_check_branch
      %234 = sbr.rel (0) target = $region21
    $region20: #{tpu_custom_call.1} parent=1 // pred_region
      %s236 = ssub.s32 2048, 2048
      %237 = vsyncadd [#allocation4], %s236
      %s238 = sshll.u32 [#allocation7], 4
      %s239 = int_to_ptr.vmem [resolvable:$true] %s238
      %244 = dma.vmem_to_hbm [thread:$0]  %s239, 2048, %s2, [#allocation4], 128, 128, 8
    $region21: #{tpu_custom_call.1} parent=1 // pred_fallthru
      _
    // Predicated region
    $region22: #{tpu_custom_call.1} parent=1 // pred_check
      _
    $region23: #{tpu_custom_call.1} parent=1 // pred_check_branch
      %246 = sbr.rel (0) target = $region25
    $region24: #{tpu_custom_call.1} parent=1 // pred_region
      %247 = dma.done [#allocation4], 2048
    $region25: #{tpu_custom_call.1} parent=1 // pred_fallthru
      _
    %248 = vsyncpa [#allocation3], 1
    %249 = vsyncpa [#allocation6], 1
    %250 = vsyncpa [#allocation4], 1

</llo_original>
